<compile_context>
chip_gen: v6e
topology: v6e:2x2x1
jax: 0.10.0
libtpu: 0.0.40
codegen_flags: <defaults>
</compile_context>

<pallas_src>
import numpy as np
import jax
import jax.numpy as jnp
from jax import lax
from jax.experimental import pallas as pl
from jax.experimental.pallas import tpu as pltpu


def _fused_exchange_kernel(i1s_ref, i1o_ref, i2s_ref, i2o_ref, s1_ref, s2_ref,
                           x1a_ref, x2b_ref, x2a_ref, x1b_ref,
                           f1_ref, f2_ref):
    """One grid step = one (spatial tile, output channel) of BOTH outputs.

    Scalar-prefetch refs (SMEM): routing tables. VMEM tiles are (N, TS, L).
    Exactly one branch per output fires -> a single dense copy, no select.
    """
    c = pl.program_id(1)          # channel axis is the innermost grid axis
    s1 = s1_ref[c]                # 1 => f1 channel c comes from the other modality (x2)
    s2 = s2_ref[c]                # 1 => f2 channel c comes from the other modality (x1)

    @pl.when(s1 == 0)
    def _():
        f1_ref[...] = x1a_ref[...]

    @pl.when(s1 != 0)
    def _():
        f1_ref[...] = x2b_ref[...]

    @pl.when(s2 == 0)
    def _():
        f2_ref[...] = x2a_ref[...]

    @pl.when(s2 != 0)
    def _():
        f2_ref[...] = x1b_ref[...]


def _routing(bn_self, bn_other, thr):
    """Per-output-channel routing tables (plain-JAX glue, C-length scalars).

    idx_self : own channel when kept; otherwise HOLDS the previous kept index
               (don't-care value chosen so the unused DMA can be elided).
    idx_other: k-th largest-|gamma| channel of the other modality when
               exchanged; at kept positions it holds the previous exchanged
               index (hold-previous for free -> DMA elision).
    sel      : 1 => take from other modality.
    """
    C = bn_self.shape[0]
    Co = bn_other.shape[0]
    keep = bn_self >= thr
    ar = jnp.arange(C, dtype=jnp.int32)

    # Hold-previous own-channel index (== c exactly where keep is True).
    pos = jnp.where(keep, ar, jnp.int32(-1))
    idx_self = jnp.maximum(lax.cummax(pos), 0).astype(jnp.int32)

    # Rank among exchanged channels; at kept positions this holds the rank of
    # the previous exchanged channel (hold-previous for free).
    rank = jnp.cumsum(jnp.logical_not(keep).astype(jnp.int32)) - 1
    # Stable descending-|gamma| order (matches the NumPy/Torch reference).
    order_other = jnp.argsort(-bn_other, stable=True).astype(jnp.int32)
    idx_other = order_other[jnp.clip(rank, 0, Co - 1)].astype(jnp.int32)

    sel = jnp.logical_not(keep).astype(jnp.int32)
    return idx_self, idx_other, sel


def _pick_spatial_tile(S, per_row_bytes, budget_bytes):
    """Largest divisor TS of S such that 12 double-buffered (N, TS, L) slabs
    fit the VMEM budget (6 specs x 2 buffers)."""
    best = 1
    for ts in range(1, S + 1):
        if S % ts != 0:
            continue
        if 12 * ts * per_row_bytes <= budget_bytes:
            best = ts
    return best


def new_exchange(features, bn_weights, bn_threshold, *, vmem_budget_bytes=40 << 20):
    """JAX/Pallas equivalent of NewExchange.forward(features, bns, bn_threshold).

    features: [x1, x2] each (N, C, H, W)
    bn_weights: [gamma1, gamma2] each (C,)  (BatchNorm2d .weight)
    """
    x1, x2 = features
    N, C, H, W = x1.shape
    assert x2.shape == x1.shape, "fused kernel assumes matching shapes"
    HW = H * W

    # Free (metadata-only) reshape: per-(n, c) spatial slab is contiguous.
    # Sublane-dense packing: minor dims become (HW//128, 128) so vregs are
    # fully packed regardless of small batch N.
    if HW % 128 == 0:
        L = 128
        S = HW // 128
    else:
        # TODO(synk): pad HW up to a multiple of 128 at the wrapper to keep
        # every store lane-dense; fallback keeps the full slab on the lane dim.
        L = HW
        S = 1
    x1f = x1.reshape(N, C, S, L)
    x2f = x2.reshape(N, C, S, L)

    itemsize = jnp.dtype(x1.dtype).itemsize
    per_row_bytes = N * L * itemsize          # bytes of one (N, 1, L) spatial row
    TS = _pick_spatial_tile(S, per_row_bytes, vmem_budget_bytes)
    slab_bytes = N * TS * L * itemsize        # one VMEM buffer
    needed_vmem = 12 * slab_bytes             # 6 specs x double buffered
    # Explicit scoped-VMEM limit: raise past v5e's 16 MiB default, stay well
    # under v7x's 64 MiB physical.
    vmem_limit = int(min(56 << 20, max(32 << 20, needed_vmem + (8 << 20))))

    bn1 = jnp.abs(bn_weights[0])
    bn2 = jnp.abs(bn_weights[1])
    i1s, i1o, s1 = _routing(bn1, bn2, bn_threshold)  # routing for f1
    i2s, i2o, s2 = _routing(bn2, bn1, bn_threshold)  # routing for f2

    # Channel dim squeezed (None) -> each VMEM tile is a dense (N, TS, L) slab.
    blk = (N, None, TS, L)
    # Channel axis innermost so hold-previous source indices stay constant on
    # consecutive steps -> the unused source's DMA is elided per step.
    grid = (S // TS, C)

    def map_x1a(s, c, i1s, i1o, i2s, i2o, s1, s2):  # x1 as "self" source of f1
        return (0, i1s[c], s, 0)

    def map_x2b(s, c, i1s, i1o, i2s, i2o, s1, s2):  # x2 as "other" source of f1
        return (0, i1o[c], s, 0)

    def map_x2a(s, c, i1s, i1o, i2s, i2o, s1, s2):  # x2 as "self" source of f2
        return (0, i2s[c], s, 0)

    def map_x1b(s, c, i1s, i1o, i2s, i2o, s1, s2):  # x1 as "other" source of f2
        return (0, i2o[c], s, 0)

    def map_out(s, c, i1s, i1o, i2s, i2o, s1, s2):
        return (0, c, s, 0)

    grid_spec = pltpu.PrefetchScalarGridSpec(
        num_scalar_prefetch=6,
        grid=grid,
        in_specs=[
            pl.BlockSpec(blk, map_x1a),
            pl.BlockSpec(blk, map_x2b),
            pl.BlockSpec(blk, map_x2a),
            pl.BlockSpec(blk, map_x1b),
        ],
        out_specs=[
            pl.BlockSpec(blk, map_out),
            pl.BlockSpec(blk, map_out),
        ],
    )

    total = N * C * HW * itemsize
    cost = pl.CostEstimate(flops=0, transcendentals=0,
                           bytes_accessed=4 * total)  # 2 reads + 2 writes

    f1, f2 = pl.pallas_call(
        _fused_exchange_kernel,
        out_shape=(jax.ShapeDtypeStruct((N, C, S, L), x1.dtype),
                   jax.ShapeDtypeStruct((N, C, S, L), x2.dtype)),
        grid_spec=grid_spec,
        compiler_params=pltpu.CompilerParams(
            # Disjoint output blocks, no accumulator -> both axes parallel
            # (lets v7x shard the channel loop across its 2 TensorCores).
            dimension_semantics=("parallel", "parallel"),
            vmem_limit_bytes=vmem_limit,
        ),
        cost_estimate=cost,
    )(i1s, i1o, i2s, i2o, s1, s2, x1f, x2f, x2f, x1f)

    return [f1.reshape(N, C, H, W), f2.reshape(N, C, H, W)]


def _ref_exchange(x1, x2, g1, g2, thr):
    """NumPy re-implementation of the PyTorch forward, for verification."""
    bn1, bn2 = np.abs(g1), np.abs(g2)
    f1 = np.zeros_like(x1)
    f2 = np.zeros_like(x2)
    o1 = np.argsort(-bn1, kind="stable")
    o2 = np.argsort(-bn2, kind="stable")
    f1[:, bn1 >= thr] = x1[:, bn1 >= thr]
    for k, c in enumerate([i for i, v in enumerate(bn1 < thr) if v]):
        f1[:, c] = x2[:, o2[k]]
    f2[:, bn2 >= thr] = x2[:, bn2 >= thr]
    for k, c in enumerate([i for i, v in enumerate(bn2 < thr) if v]):
        f2[:, c] = x1[:, o1[k]]
    return f1, f2


if __name__ == "__main__":
    key = jax.random.PRNGKey(0)
    k1, k2, k3, k4 = jax.random.split(key, 4)

    N, C, H, W = 2, 4, 16, 16
    x1 = jax.random.normal(k1, (N, C, H, W), dtype=jnp.float32)
    x2 = jax.random.normal(k2, (N, C, H, W), dtype=jnp.float32)

    # Deterministic synthetic BatchNorm2d gammas (shape [C]); random so that
    # some channels fall below / above the threshold.
    gamma1 = jax.random.normal(k3, (C,), dtype=jnp.float32)
    gamma2 = jax.random.normal(k4, (C,), dtype=jnp.float32)
    bn_threshold = 0.5

    out1, out2 = new_exchange([x1, x2], [gamma1, gamma2], bn_threshold)
    out1 = jax.block_until_ready(out1)
    out2 = jax.block_until_ready(out2)

    ref1, ref2 = _ref_exchange(
        np.asarray(x1), np.asarray(x2),
        np.asarray(gamma1), np.asarray(gamma2), bn_threshold)
    np.testing.assert_allclose(np.asarray(out1), ref1, rtol=0, atol=0)
    np.testing.assert_allclose(np.asarray(out2), ref2, rtol=0, atol=0)

    print("KERNEL_OK")
</pallas_src>

<mosaic_0001>
module attributes {stable_mosaic.version = 11 : i64} {
  func.func @_fused_exchange_kernel(%arg0: i32, %arg1: i32, %arg2: memref<4xi32, #tpu.memory_space<smem>>, %arg3: memref<4xi32, #tpu.memory_space<smem>>, %arg4: memref<4xi32, #tpu.memory_space<smem>>, %arg5: memref<4xi32, #tpu.memory_space<smem>>, %arg6: memref<4xi32, #tpu.memory_space<smem>>, %arg7: memref<4xi32, #tpu.memory_space<smem>>, %arg8: memref<2x1x2x128xf32, #tpu.memory_space<vmem>>, %arg9: memref<2x1x2x128xf32, #tpu.memory_space<vmem>>, %arg10: memref<2x1x2x128xf32, #tpu.memory_space<vmem>>, %arg11: memref<2x1x2x128xf32, #tpu.memory_space<vmem>>, %arg12: memref<2x1x2x128xf32, #tpu.memory_space<vmem>>, %arg13: memref<2x1x2x128xf32, #tpu.memory_space<vmem>>) attributes {dimension_semantics = [#tpu.dimension_semantics<parallel>, #tpu.dimension_semantics<parallel>], iteration_bounds = array<i64: 1, 4>, scalar_prefetch = 6 : i64, scratch_operands = 0 : i64, tpu.core_type = #tpu.core_type<tc>, window_params = [{transform_indices = @transform_0, window_bounds = array<i64: 2, 1, 2, 128>}, {transform_indices = @transform_1, window_bounds = array<i64: 2, 1, 2, 128>}, {transform_indices = @transform_2, window_bounds = array<i64: 2, 1, 2, 128>}, {transform_indices = @transform_3, window_bounds = array<i64: 2, 1, 2, 128>}, {transform_indices = @transform_4, window_bounds = array<i64: 2, 1, 2, 128>}, {transform_indices = @transform_5, window_bounds = array<i64: 2, 1, 2, 128>}]} {
    %0 = arith.index_cast %arg1 : i32 to index
    %1 = memref.load %arg6[%0] : memref<4xi32, #tpu.memory_space<smem>>
    %2 = arith.index_cast %arg1 : i32 to index
    %3 = memref.load %arg7[%2] : memref<4xi32, #tpu.memory_space<smem>>
    %c0_i32 = arith.constant 0 : i32
    %4 = arith.cmpi eq, %1, %c0_i32 : i32
    %5 = arith.extui %4 : i1 to i32
    %c0_i32_0 = arith.constant 0 : i32
    %6 = arith.cmpi ne, %5, %c0_i32_0 : i32
    scf.if %6 {
      %c0 = arith.constant 0 : index
      %c0_7 = arith.constant 0 : index
      %c0_8 = arith.constant 0 : index
      %c0_9 = arith.constant 0 : index
      %16 = vector.load %arg8[%c0, %c0_7, %c0_8, %c0_9] : memref<2x1x2x128xf32, #tpu.memory_space<vmem>>, vector<2x1x2x128xf32>
      %17 = vector.shape_cast %16 : vector<2x1x2x128xf32> to vector<2x2x128xf32>
      %c0_10 = arith.constant 0 : index
      %c0_11 = arith.constant 0 : index
      %c0_12 = arith.constant 0 : index
      %c0_13 = arith.constant 0 : index
      %18 = vector.load %arg12[%c0_10, %c0_11, %c0_12, %c0_13] : memref<2x1x2x128xf32, #tpu.memory_space<vmem>>, vector<2x1x2x128xf32>
      %19 = vector.shape_cast %18 : vector<2x1x2x128xf32> to vector<2x2x128xf32>
      %20 = vector.shape_cast %17 : vector<2x2x128xf32> to vector<2x1x2x128xf32>
      tpu.vector_store %arg12[%c0_10, %c0_11, %c0_12, %c0_13], %20 {strides = array<i32>} : memref<2x1x2x128xf32, #tpu.memory_space<vmem>>, vector<2x1x2x128xf32>,
    } else {
    }
    %c0_i32_1 = arith.constant 0 : i32
    %7 = arith.cmpi ne, %1, %c0_i32_1 : i32
    %8 = arith.extui %7 : i1 to i32
    %c0_i32_2 = arith.constant 0 : i32
    %9 = arith.cmpi ne, %8, %c0_i32_2 : i32
    scf.if %9 {
      %c0 = arith.constant 0 : index
      %c0_7 = arith.constant 0 : index
      %c0_8 = arith.constant 0 : index
      %c0_9 = arith.constant 0 : index
      %16 = vector.load %arg9[%c0, %c0_7, %c0_8, %c0_9] : memref<2x1x2x128xf32, #tpu.memory_space<vmem>>, vector<2x1x2x128xf32>
      %17 = vector.shape_cast %16 : vector<2x1x2x128xf32> to vector<2x2x128xf32>
      %c0_10 = arith.constant 0 : index
      %c0_11 = arith.constant 0 : index
      %c0_12 = arith.constant 0 : index
      %c0_13 = arith.constant 0 : index
      %18 = vector.load %arg12[%c0_10, %c0_11, %c0_12, %c0_13] : memref<2x1x2x128xf32, #tpu.memory_space<vmem>>, vector<2x1x2x128xf32>
      %19 = vector.shape_cast %18 : vector<2x1x2x128xf32> to vector<2x2x128xf32>
      %20 = vector.shape_cast %17 : vector<2x2x128xf32> to vector<2x1x2x128xf32>
      tpu.vector_store %arg12[%c0_10, %c0_11, %c0_12, %c0_13], %20 {strides = array<i32>} : memref<2x1x2x128xf32, #tpu.memory_space<vmem>>, vector<2x1x2x128xf32>,
    } else {
    }
    %c0_i32_3 = arith.constant 0 : i32
    %10 = arith.cmpi eq, %3, %c0_i32_3 : i32
    %11 = arith.extui %10 : i1 to i32
    %c0_i32_4 = arith.constant 0 : i32
    %12 = arith.cmpi ne, %11, %c0_i32_4 : i32
    scf.if %12 {
      %c0 = arith.constant 0 : index
      %c0_7 = arith.constant 0 : index
      %c0_8 = arith.constant 0 : index
      %c0_9 = arith.constant 0 : index
      %16 = vector.load %arg10[%c0, %c0_7, %c0_8, %c0_9] : memref<2x1x2x128xf32, #tpu.memory_space<vmem>>, vector<2x1x2x128xf32>
      %17 = vector.shape_cast %16 : vector<2x1x2x128xf32> to vector<2x2x128xf32>
      %c0_10 = arith.constant 0 : index
      %c0_11 = arith.constant 0 : index
      %c0_12 = arith.constant 0 : index
      %c0_13 = arith.constant 0 : index
      %18 = vector.load %arg13[%c0_10, %c0_11, %c0_12, %c0_13] : memref<2x1x2x128xf32, #tpu.memory_space<vmem>>, vector<2x1x2x128xf32>
      %19 = vector.shape_cast %18 : vector<2x1x2x128xf32> to vector<2x2x128xf32>
      %20 = vector.shape_cast %17 : vector<2x2x128xf32> to vector<2x1x2x128xf32>
      tpu.vector_store %arg13[%c0_10, %c0_11, %c0_12, %c0_13], %20 {strides = array<i32>} : memref<2x1x2x128xf32, #tpu.memory_space<vmem>>, vector<2x1x2x128xf32>,
    } else {
    }
    %c0_i32_5 = arith.constant 0 : i32
    %13 = arith.cmpi ne, %3, %c0_i32_5 : i32
    %14 = arith.extui %13 : i1 to i32
    %c0_i32_6 = arith.constant 0 : i32
    %15 = arith.cmpi ne, %14, %c0_i32_6 : i32
    scf.if %15 {
      %c0 = arith.constant 0 : index
      %c0_7 = arith.constant 0 : index
      %c0_8 = arith.constant 0 : index
      %c0_9 = arith.constant 0 : index
      %16 = vector.load %arg11[%c0, %c0_7, %c0_8, %c0_9] : memref<2x1x2x128xf32, #tpu.memory_space<vmem>>, vector<2x1x2x128xf32>
      %17 = vector.shape_cast %16 : vector<2x1x2x128xf32> to vector<2x2x128xf32>
      %c0_10 = arith.constant 0 : index
      %c0_11 = arith.constant 0 : index
      %c0_12 = arith.constant 0 : index
      %c0_13 = arith.constant 0 : index
      %18 = vector.load %arg13[%c0_10, %c0_11, %c0_12, %c0_13] : memref<2x1x2x128xf32, #tpu.memory_space<vmem>>, vector<2x1x2x128xf32>
      %19 = vector.shape_cast %18 : vector<2x1x2x128xf32> to vector<2x2x128xf32>
      %20 = vector.shape_cast %17 : vector<2x2x128xf32> to vector<2x1x2x128xf32>
      tpu.vector_store %arg13[%c0_10, %c0_11, %c0_12, %c0_13], %20 {strides = array<i32>} : memref<2x1x2x128xf32, #tpu.memory_space<vmem>>, vector<2x1x2x128xf32>,
    } else {
    }
    return
  }
  func.func @transform_0(%arg0: i32, %arg1: i32, %arg2: memref<4xi32, #tpu.memory_space<smem>>, %arg3: memref<4xi32, #tpu.memory_space<smem>>, %arg4: memref<4xi32, #tpu.memory_space<smem>>, %arg5: memref<4xi32, #tpu.memory_space<smem>>, %arg6: memref<4xi32, #tpu.memory_space<smem>>, %arg7: memref<4xi32, #tpu.memory_space<smem>>) -> (i32, i32, i32, i32) {
    %0 = arith.index_cast %arg1 : i32 to index
    %1 = memref.load %arg2[%0] : memref<4xi32, #tpu.memory_space<smem>>
    %c0_i32 = arith.constant 0 : i32
    %c0_i32_0 = arith.constant 0 : i32
    %c0_i32_1 = arith.constant 0 : i32
    return %c0_i32, %1, %arg0, %c0_i32_0 : i32, i32, i32, i32
  }
  func.func @transform_1(%arg0: i32, %arg1: i32, %arg2: memref<4xi32, #tpu.memory_space<smem>>, %arg3: memref<4xi32, #tpu.memory_space<smem>>, %arg4: memref<4xi32, #tpu.memory_space<smem>>, %arg5: memref<4xi32, #tpu.memory_space<smem>>, %arg6: memref<4xi32, #tpu.memory_space<smem>>, %arg7: memref<4xi32, #tpu.memory_space<smem>>) -> (i32, i32, i32, i32) {
    %0 = arith.index_cast %arg1 : i32 to index
    %1 = memref.load %arg3[%0] : memref<4xi32, #tpu.memory_space<smem>>
    %c0_i32 = arith.constant 0 : i32
    %c0_i32_0 = arith.constant 0 : i32
    %c0_i32_1 = arith.constant 0 : i32
    return %c0_i32, %1, %arg0, %c0_i32_0 : i32, i32, i32, i32
  }
  func.func @transform_2(%arg0: i32, %arg1: i32, %arg2: memref<4xi32, #tpu.memory_space<smem>>, %arg3: memref<4xi32, #tpu.memory_space<smem>>, %arg4: memref<4xi32, #tpu.memory_space<smem>>, %arg5: memref<4xi32, #tpu.memory_space<smem>>, %arg6: memref<4xi32, #tpu.memory_space<smem>>, %arg7: memref<4xi32, #tpu.memory_space<smem>>) -> (i32, i32, i32, i32) {
    %0 = arith.index_cast %arg1 : i32 to index
    %1 = memref.load %arg4[%0] : memref<4xi32, #tpu.memory_space<smem>>
    %c0_i32 = arith.constant 0 : i32
    %c0_i32_0 = arith.constant 0 : i32
    %c0_i32_1 = arith.constant 0 : i32
    return %c0_i32, %1, %arg0, %c0_i32_0 : i32, i32, i32, i32
  }
  func.func @transform_3(%arg0: i32, %arg1: i32, %arg2: memref<4xi32, #tpu.memory_space<smem>>, %arg3: memref<4xi32, #tpu.memory_space<smem>>, %arg4: memref<4xi32, #tpu.memory_space<smem>>, %arg5: memref<4xi32, #tpu.memory_space<smem>>, %arg6: memref<4xi32, #tpu.memory_space<smem>>, %arg7: memref<4xi32, #tpu.memory_space<smem>>) -> (i32, i32, i32, i32) {
    %0 = arith.index_cast %arg1 : i32 to index
    %1 = memref.load %arg5[%0] : memref<4xi32, #tpu.memory_space<smem>>
    %c0_i32 = arith.constant 0 : i32
    %c0_i32_0 = arith.constant 0 : i32
    %c0_i32_1 = arith.constant 0 : i32
    return %c0_i32, %1, %arg0, %c0_i32_0 : i32, i32, i32, i32
  }
  func.func @transform_4(%arg0: i32, %arg1: i32, %arg2: memref<4xi32, #tpu.memory_space<smem>>, %arg3: memref<4xi32, #tpu.memory_space<smem>>, %arg4: memref<4xi32, #tpu.memory_space<smem>>, %arg5: memref<4xi32, #tpu.memory_space<smem>>, %arg6: memref<4xi32, #tpu.memory_space<smem>>, %arg7: memref<4xi32, #tpu.memory_space<smem>>) -> (i32, i32, i32, i32) {
    %c0_i32 = arith.constant 0 : i32
    %c0_i32_0 = arith.constant 0 : i32
    %c0_i32_1 = arith.constant 0 : i32
    return %c0_i32, %arg1, %arg0, %c0_i32_0 : i32, i32, i32, i32
  }
  func.func @transform_5(%arg0: i32, %arg1: i32, %arg2: memref<4xi32, #tpu.memory_space<smem>>, %arg3: memref<4xi32, #tpu.memory_space<smem>>, %arg4: memref<4xi32, #tpu.memory_space<smem>>, %arg5: memref<4xi32, #tpu.memory_space<smem>>, %arg6: memref<4xi32, #tpu.memory_space<smem>>, %arg7: memref<4xi32, #tpu.memory_space<smem>>) -> (i32, i32, i32, i32) {
    %c0_i32 = arith.constant 0 : i32
    %c0_i32_0 = arith.constant 0 : i32
    %c0_i32_1 = arith.constant 0 : i32
    return %c0_i32, %arg1, %arg0, %c0_i32_0 : i32, i32, i32, i32
  }
}

</mosaic_0001>

<llo_original>
// kernel: tpu_custom_call.1
$region0: #{tpu_custom_call.1}
  #allocation0 [shape = 'u32[]', space=smem, size = 0x4, offset = 0x4, fixed_abs, tag = 'smem constant byte address 0x4 - core index']
  #allocation1 [shape = 'u32[144,128]{1,0:T(1,128)}', space=vmem, size = 0x12000, scoped, tag = 'internal scratch']
  #allocation2 [shape = 's32[1]{0}', space=sflag, size = 0x4, scoped, tag = 'scoped memory for tpu_custom_call.1']
  #allocation3 [shape = 'u8[512]{0}', space=smem, size = 0x200, scoped, tag = 'prefetched SMEM operand 0']
  #allocation4 [shape = 'u8[512]{0}', space=smem, size = 0x200, scoped, tag = 'prefetched SMEM operand 1']
  #allocation5 [shape = 'u8[512]{0}', space=smem, size = 0x200, scoped, tag = 'prefetched SMEM operand 2']
  #allocation6 [shape = 'u8[512]{0}', space=smem, size = 0x200, scoped, tag = 'prefetched SMEM operand 3']
  #allocation7 [shape = 'u8[512]{0}', space=smem, size = 0x200, scoped, tag = 'prefetched SMEM operand 4']
  #allocation8 [shape = 'u8[512]{0}', space=smem, size = 0x200, scoped, tag = 'prefetched SMEM operand 5']
  %s0 = inlined_call_operand.hbm [shape: s32[4], index: 0, kind: input, shape index: {}]
  %s1 = inlined_call_operand.hbm [shape: s32[4], index: 1, kind: input, shape index: {}]
  %s2 = inlined_call_operand.hbm [shape: s32[4], index: 2, kind: input, shape index: {}]
  %s3 = inlined_call_operand.hbm [shape: s32[4], index: 3, kind: input, shape index: {}]
  %s4 = inlined_call_operand.hbm [shape: s32[4], index: 4, kind: input, shape index: {}]
  %s5 = inlined_call_operand.hbm [shape: s32[4], index: 5, kind: input, shape index: {}]
  %s6 = inlined_call_operand.hbm [shape: f32[2,4,2,128], index: 6, kind: input, shape index: {}]
  %s7 = inlined_call_operand.hbm [shape: f32[2,4,2,128], index: 7, kind: input, shape index: {}]
  %s8 = inlined_call_operand.hbm [shape: f32[2,4,2,128], index: 8, kind: input, shape index: {}]
  %s9 = inlined_call_operand.vmem [shape: f32[2,4,2,128], index: 9, kind: input, shape index: {}]
  %s10 = inlined_call_operand.hbm [shape: f32[2,4,2,128], index: 10, kind: output, shape index: {0}]
  %s11 = inlined_call_operand.hbm [shape: f32[2,4,2,128], index: 11, kind: output, shape index: {1}]
  %12 = xla_tuple %s10, %s11
  %s13 = sld [smem:[#allocation0]]
  $region119: #{tpu_custom_call.1} parent=0
    _
  %s15 = ssub.s32 1, %s13
  %s16 = scalar_select 0, %s15, %s13
  %18 = dma.hbm_to_smem %s0, 16, [#allocation3], [#allocation2]
  %20 = dma.hbm_to_smem %s1, 16, [#allocation4], [#allocation2]
  %22 = dma.hbm_to_smem %s2, 16, [#allocation5], [#allocation2]
  %24 = dma.hbm_to_smem %s3, 16, [#allocation6], [#allocation2]
  %26 = dma.hbm_to_smem %s4, 16, [#allocation7], [#allocation2]
  %28 = dma.hbm_to_smem %s5, 16, [#allocation8], [#allocation2]
  %29 = dma.done [#allocation2], 96
  %30 = sfence
  $region1: #{tpu_custom_call.1} parent=0
    #allocation9 [shape = 'u8[4096]{0}', space=vmem, size = 0x1000, scoped, tag = 'input window, operand 6']
    #allocation10 [shape = 's32[2]{0}', space=sflag, size = 0x8, scoped, tag = 'scoped memory for tpu_custom_call.1']
    #allocation11 [shape = 's32[2]{0}', space=sflag, size = 0x8, scoped, tag = 'scoped memory for tpu_custom_call.1']
    #allocation12 [shape = 'u8[4096]{0}', space=vmem, size = 0x1000, scoped, tag = 'input window, operand 7']
    #allocation13 [shape = 's32[2]{0}', space=sflag, size = 0x8, scoped, tag = 'scoped memory for tpu_custom_call.1']
    #allocation14 [shape = 'u8[4096]{0}', space=vmem, size = 0x1000, scoped, tag = 'input window, operand 8']
    #allocation15 [shape = 'u8[4096]{0}', space=vmem, size = 0x1000, scoped, tag = 'input window, operand 9']
    #allocation16 [shape = 'u8[4096]{0}', space=vmem, size = 0x1000, scoped, tag = 'output window, operand 0']
    #allocation17 [shape = 'u8[4096]{0}', space=vmem, size = 0x1000, scoped, tag = 'output window, operand 1']
    #allocation18 [shape = 's32[2]{0}', space=sflag, size = 0x8, scoped, tag = 'scoped memory for tpu_custom_call.1']
    %31 = vsyncpa [#allocation10], 0
    %s32 = scalar_lea.sflag [#allocation10], 1
    %33 = vsyncpa %s32, 0
    %34 = vsyncpa [#allocation13], 0
    %s35 = scalar_lea.sflag [#allocation13], 1
    %36 = vsyncpa %s35, 0
    %37 = vsyncpa [#allocation11], 0
    %s38 = scalar_lea.sflag [#allocation11], 1
    %39 = vsyncpa %s38, 0
    %40 = vsyncpa [#allocation18], 0
    %s41 = scalar_lea.sflag [#allocation18], 1
    %42 = vsyncpa %s41, 0
    loop: start=0, step=1, limit=6
    $region2: #{tpu_custom_call.1} parent=1 // loop_pre_header
      _
    $region3: #{tpu_custom_call.1} parent=1 // loop_header
      %s44 = sphi 0, %s48
      %p45 = scmp.ge.s32.totalorder %s44, 6
      %s51 = sphi 0, %s63
      %s52 = sphi 0, %s59
      %s53 = sphi 0, %s51
      %s54 = sphi 0, %s52
      %s55 = sphi 0, %s53
      %s56 = sphi 0, %s54
      %s70 = sphi 0, %s72
      %s73 = sphi 0, %s70
      %s74 = sphi 0, %s73
      %s90 = sphi 0, %s74
      %s100 = sphi 0, %s102
      %s103 = sphi 0, %s100
      %s104 = sphi 0, %s103
      %s120 = sphi 0, %s104
      %s130 = sphi 0, %s132
      %s133 = sphi 0, %s130
      %s134 = sphi 0, %s133
      %s150 = sphi 0, %s134
      %s160 = sphi 0, %s162
      %s163 = sphi 0, %s160
      %s164 = sphi 0, %s163
      %s180 = sphi 0, %s164
      %s188 = sphi 0, %s190
      %s191 = sphi 0, %s188
      %s192 = sphi 0, %s191
      %s208 = sphi 0, %s192
      %s216 = sphi 0, %s218
      %s219 = sphi 0, %s216
      %s220 = sphi 0, %s219
      %s236 = sphi 0, %s220
    $region4: #{tpu_custom_call.1} parent=1 // loop_header_branch
      %47 = sbr.rel (%p45) target = $region8
    $region5: #{tpu_custom_call.1} parent=1 // loop_body
      %s49 = ssub.s32 %s44, 1
      %s50 = ssub.s32 %s44, 2
      %s57 = sadd.s32 1, %s52
      %p58 = scmp.ge.s32.totalorder %s57, 4
      %s59 = scalar_select %p58, 0, %s57
      %s60 = sadd.s32 1, %s51
      %s61 = scalar_select %p58, %s60, %s51
      %p62 = scmp.ge.s32.totalorder %s61, 1
      %s63 = scalar_select %p62, 0, %s61
      %s64 = sld [smem:[#allocation3 + %s52]]
      %s65 = sld [smem:[#allocation3 + %s59]]
      %s66 = ssub.s32 %s64, %s65
      %s67 = ssub.s32 %s51, %s63
      %s68 = sor.u32 %s66, %s67
      %p69 = scmp.eq.s32.totalorder %s68, 0
      %s71 = sadd.s32 %s70, 1
      %s72 = scalar_select %p69, %s70, %s71
      %p75 = pneg %p69
      %p76 = scmp.eq.s32.totalorder %s44, 3
      %p77 = por %p75, %p76
      %p78 = scmp.ne.s32.totalorder %s70, %s73
      %p79 = scmp.eq.s32.totalorder %s44, 0
      %p80 = por %p78, %p79
      %p81 = scmp.ne.s32.totalorder %s70, %s73
      %p82 = scmp.eq.s32.totalorder %s49, 3
      %p83 = por %p81, %p82
      %p84 = scmp.ne.s32.totalorder %s73, %s74
      %p85 = scmp.eq.s32.totalorder %s49, 0
      %p86 = por %p84, %p85
      %p87 = scmp.ne.s32.totalorder %s73, %s74
      %p88 = scmp.eq.s32.totalorder %s50, 3
      %p89 = por %p87, %p88
      %p91 = scmp.ne.s32.totalorder %s74, %s90
      %p92 = scmp.eq.s32.totalorder %s50, 0
      %p93 = por %p91, %p92
      %s94 = sld [smem:[#allocation4 + %s52]]
      %s95 = sld [smem:[#allocation4 + %s59]]
      %s96 = ssub.s32 %s94, %s95
      %s97 = ssub.s32 %s51, %s63
      %s98 = sor.u32 %s96, %s97
      %p99 = scmp.eq.s32.totalorder %s98, 0
      %s101 = sadd.s32 %s100, 1
      %s102 = scalar_select %p99, %s100, %s101
      %p105 = pneg %p99
      %p106 = scmp.eq.s32.totalorder %s44, 3
      %p107 = por %p105, %p106
      %p108 = scmp.ne.s32.totalorder %s100, %s103
      %p109 = scmp.eq.s32.totalorder %s44, 0
      %p110 = por %p108, %p109
      %p111 = scmp.ne.s32.totalorder %s100, %s103
      %p112 = scmp.eq.s32.totalorder %s49, 3
      %p113 = por %p111, %p112
      %p114 = scmp.ne.s32.totalorder %s103, %s104
      %p115 = scmp.eq.s32.totalorder %s49, 0
      %p116 = por %p114, %p115
      %p117 = scmp.ne.s32.totalorder %s103, %s104
      %p118 = scmp.eq.s32.totalorder %s50, 3
      %p119 = por %p117, %p118
      %p121 = scmp.ne.s32.totalorder %s104, %s120
      %p122 = scmp.eq.s32.totalorder %s50, 0
      %p123 = por %p121, %p122
      %s124 = sld [smem:[#allocation5 + %s52]]
      %s125 = sld [smem:[#allocation5 + %s59]]
      %s126 = ssub.s32 %s124, %s125
      %s127 = ssub.s32 %s51, %s63
      %s128 = sor.u32 %s126, %s127
      %p129 = scmp.eq.s32.totalorder %s128, 0
      %s131 = sadd.s32 %s130, 1
      %s132 = scalar_select %p129, %s130, %s131
      %p135 = pneg %p129
      %p136 = scmp.eq.s32.totalorder %s44, 3
      %p137 = por %p135, %p136
      %p138 = scmp.ne.s32.totalorder %s130, %s133
      %p139 = scmp.eq.s32.totalorder %s44, 0
      %p140 = por %p138, %p139
      %p141 = scmp.ne.s32.totalorder %s130, %s133
      %p142 = scmp.eq.s32.totalorder %s49, 3
      %p143 = por %p141, %p142
      %p144 = scmp.ne.s32.totalorder %s133, %s134
      %p145 = scmp.eq.s32.totalorder %s49, 0
      %p146 = por %p144, %p145
      %p147 = scmp.ne.s32.totalorder %s133, %s134
      %p148 = scmp.eq.s32.totalorder %s50, 3
      %p149 = por %p147, %p148
      %p151 = scmp.ne.s32.totalorder %s134, %s150
      %p152 = scmp.eq.s32.totalorder %s50, 0
      %p153 = por %p151, %p152
      %s154 = sld [smem:[#allocation6 + %s52]]
      %s155 = sld [smem:[#allocation6 + %s59]]
      %s156 = ssub.s32 %s154, %s155
      %s157 = ssub.s32 %s51, %s63
      %s158 = sor.u32 %s156, %s157
      %p159 = scmp.eq.s32.totalorder %s158, 0
      %s161 = sadd.s32 %s160, 1
      %s162 = scalar_select %p159, %s160, %s161
      %p165 = pneg %p159
      %p166 = scmp.eq.s32.totalorder %s44, 3
      %p167 = por %p165, %p166
      %p168 = scmp.ne.s32.totalorder %s160, %s163
      %p169 = scmp.eq.s32.totalorder %s44, 0
      %p170 = por %p168, %p169
      %p171 = scmp.ne.s32.totalorder %s160, %s163
      %p172 = scmp.eq.s32.totalorder %s49, 3
      %p173 = por %p171, %p172
      %p174 = scmp.ne.s32.totalorder %s163, %s164
      %p175 = scmp.eq.s32.totalorder %s49, 0
      %p176 = por %p174, %p175
      %p177 = scmp.ne.s32.totalorder %s163, %s164
      %p178 = scmp.eq.s32.totalorder %s50, 3
      %p179 = por %p177, %p178
      %p181 = scmp.ne.s32.totalorder %s164, %s180
      %p182 = scmp.eq.s32.totalorder %s50, 0
      %p183 = por %p181, %p182
      %s184 = ssub.s32 %s52, %s59
      %s185 = ssub.s32 %s51, %s63
      %s186 = sor.u32 %s184, %s185
      %p187 = scmp.eq.s32.totalorder %s186, 0
      %s189 = sadd.s32 %s188, 1
      %s190 = scalar_select %p187, %s188, %s189
      %p193 = pneg %p187
      %p194 = scmp.eq.s32.totalorder %s44, 3
      %p195 = por %p193, %p194
      %p196 = scmp.ne.s32.totalorder %s188, %s191
      %p197 = scmp.eq.s32.totalorder %s44, 0
      %p198 = por %p196, %p197
      %p199 = scmp.ne.s32.totalorder %s188, %s191
      %p200 = scmp.eq.s32.totalorder %s49, 3
      %p201 = por %p199, %p200
      %p202 = scmp.ne.s32.totalorder %s191, %s192
      %p203 = scmp.eq.s32.totalorder %s49, 0
      %p204 = por %p202, %p203
      %p205 = scmp.ne.s32.totalorder %s191, %s192
      %p206 = scmp.eq.s32.totalorder %s50, 3
      %p207 = por %p205, %p206
      %p209 = scmp.ne.s32.totalorder %s192, %s208
      %p210 = scmp.eq.s32.totalorder %s50, 0
      %p211 = por %p209, %p210
      %s212 = ssub.s32 %s52, %s59
      %s213 = ssub.s32 %s51, %s63
      %s214 = sor.u32 %s212, %s213
      %p215 = scmp.eq.s32.totalorder %s214, 0
      %s217 = sadd.s32 %s216, 1
      %s218 = scalar_select %p215, %s216, %s217
      %p221 = pneg %p215
      %p222 = scmp.eq.s32.totalorder %s44, 3
      %p223 = por %p221, %p222
      %p224 = scmp.ne.s32.totalorder %s216, %s219
      %p225 = scmp.eq.s32.totalorder %s44, 0
      %p226 = por %p224, %p225
      %p227 = scmp.ne.s32.totalorder %s216, %s219
      %p228 = scmp.eq.s32.totalorder %s49, 3
      %p229 = por %p227, %p228
      %p230 = scmp.ne.s32.totalorder %s219, %s220
      %p231 = scmp.eq.s32.totalorder %s49, 0
      %p232 = por %p230, %p231
      %p233 = scmp.ne.s32.totalorder %s219, %s220
      %p234 = scmp.eq.s32.totalorder %s50, 3
      %p235 = por %p233, %p234
      %p237 = scmp.ne.s32.totalorder %s220, %s236
      %p238 = scmp.eq.s32.totalorder %s50, 0
      %p239 = por %p237, %p238
      %p240 = scmp.le.s32.totalorder 1, %s44
      %p241 = scmp.lt.s32.totalorder %s44, 5
      %p242 = pnand %p240, %p241
      %p243 = pneg %p242
      // Predicated region
      $region9: #{tpu_custom_call.1} parent=5 // pred_check
        _
      $region10: #{tpu_custom_call.1} parent=5 // pred_check_branch
        %245 = sbr.rel (%p242) target = $region12
      $region11: #{tpu_custom_call.1} parent=5 // pred_region
        %s246 = ssub.s32 %s44, 1
      $region12: #{tpu_custom_call.1} parent=5 // pred_fallthru
        _
      %p247 = scmp.lt.s32.totalorder %s44, 4
      // Predicated region
      $region13: #{tpu_custom_call.1} parent=5 // pred_check
        %p248 = pneg %p247
      $region14: #{tpu_custom_call.1} parent=5 // pred_check_branch
        %250 = sbr.rel (%p248) target = $region16
      $region15: #{tpu_custom_call.1} parent=5 // pred_region
        // Predicated region
        $region17: #{tpu_custom_call.1} parent=15 // pred_check
          %p251 = pneg %p80
        $region18: #{tpu_custom_call.1} parent=15 // pred_check_branch
          %253 = sbr.rel (%p251) target = $region20
        $region19: #{tpu_custom_call.1} parent=15 // pred_region
          %s254 = sand.u32 %s70, 1
          %s255 = scalar_lea.sflag [#allocation10], %s254
          %s256 = sand.u32 %s70, 1
          %s257 = smul.addr %s256, 4
          %s258 = scalar_lea.vmem [#allocation9], %s257
          %s259 = sld [smem:[#allocation3 + %s52]]
          %s261 = ssub.s32 64, 64
          %262 = vsyncadd %s255, %s261
          %s263 = sadd.s32 %s51, %s259
          %s264 = smul.addr %s263, 32
          %s265 = scalar_lea.hbm %s6, %s264
          %s266 = sshll.u32 %s258, 4
          %s267 = int_to_ptr.vmem [resolvable:$true] %s266
          %272 = dma.hbm_to_vmem [thread:$0]  %s265, 64, %s267, %s255, 128, 32, 2
        $region20: #{tpu_custom_call.1} parent=15 // pred_fallthru
          _
        // Predicated region
        $region21: #{tpu_custom_call.1} parent=15 // pred_check
          %p273 = pneg %p110
        $region22: #{tpu_custom_call.1} parent=15 // pred_check_branch
          %275 = sbr.rel (%p273) target = $region24
        $region23: #{tpu_custom_call.1} parent=15 // pred_region
          %s276 = sand.u32 %s44, 1
          %s277 = scalar_lea.sflag [#allocation13], %s276
          %s278 = sand.u32 %s100, 1
          %s279 = smul.addr %s278, 4
          %s280 = scalar_lea.vmem [#allocation12], %s279
          %s281 = sld [smem:[#allocation4 + %s52]]
          %s283 = ssub.s32 64, 64
          %284 = vsyncadd %s277, %s283
          %s285 = sadd.s32 %s51, %s281
          %s286 = smul.addr %s285, 32
          %s287 = scalar_lea.hbm %s7, %s286
          %s288 = sshll.u32 %s280, 4
          %s289 = int_to_ptr.vmem [resolvable:$true] %s288
          %294 = dma.hbm_to_vmem [thread:$0]  %s287, 64, %s289, %s277, 128, 32, 2
        $region24: #{tpu_custom_call.1} parent=15 // pred_fallthru
          _
        // Predicated region
        $region25: #{tpu_custom_call.1} parent=15 // pred_check
          %p295 = pneg %p140
        $region26: #{tpu_custom_call.1} parent=15 // pred_check_branch
          %297 = sbr.rel (%p295) target = $region28
        $region27: #{tpu_custom_call.1} parent=15 // pred_region
          %s298 = sand.u32 %s44, 1
          %s299 = scalar_lea.sflag [#allocation13], %s298
          %s300 = sand.u32 %s130, 1
          %s301 = smul.addr %s300, 4
          %s302 = scalar_lea.vmem [#allocation14], %s301
          %s303 = sld [smem:[#allocation5 + %s52]]
          %s305 = ssub.s32 64, 64
          %306 = vsyncadd %s299, %s305
          %s307 = sadd.s32 %s51, %s303
          %s308 = smul.addr %s307, 32
          %s309 = scalar_lea.hbm %s8, %s308
          %s310 = sshll.u32 %s302, 4
          %s311 = int_to_ptr.vmem [resolvable:$true] %s310
          %316 = dma.hbm_to_vmem [thread:$0]  %s309, 64, %s311, %s299, 128, 32, 2
        $region28: #{tpu_custom_call.1} parent=15 // pred_fallthru
          _
        // Predicated region
        $region29: #{tpu_custom_call.1} parent=15 // pred_check
          %p317 = pneg %p170
        $region30: #{tpu_custom_call.1} parent=15 // pred_check_branch
          %319 = sbr.rel (%p317) target = $region32
        $region31: #{tpu_custom_call.1} parent=15 // pred_region
          %s320 = sand.u32 %s160, 1
          %s321 = sand.u32 %s160, 1
          %s322 = smul.addr %s321, 4
          %s323 = scalar_lea.vmem [#allocation15], %s322
          %s324 = sld [smem:[#allocation6 + %s52]]
          %s325 = sadd.s32 %s51, %s324
          %s326 = smul.addr %s325, 2
          %s327 = scalar_lea.vmem %s9, %s326
          // Predicated region
          $region33: #{tpu_custom_call.1} parent=31 // pred_check
            _
          $region34: #{tpu_custom_call.1} parent=31 // pred_check_branch
            %329 = sbr.rel (0) target = $region36
          $region35: #{tpu_custom_call.1} parent=31 // pred_region
            // Predicated region
            $region37: #{tpu_custom_call.1} parent=35 // pred_check
              _
            $region38: #{tpu_custom_call.1} parent=35 // pred_check_branch
              %331 = sbr.rel target = $region40
            $region39: #{tpu_custom_call.1} parent=35 // pred_region
              // Predicated region
              $region52: #{tpu_custom_call.1} parent=39 // pred_check
                _
              $region53: #{tpu_custom_call.1} parent=39 // pred_check_branch
                %349 = sbr.rel (0) target = $region55
              $region54: #{tpu_custom_call.1} parent=39 // pred_region
                %s351 = ssub.s32 4, 1
                loop: start=0, step=1, limit=1
                $region56: #{tpu_custom_call.1} parent=54 // loop_pre_header
                  _
                $region57: #{tpu_custom_call.1} parent=54 // loop_header
                  %s353 = sphi 0, %s357
                  %p354 = scmp.ge.s32.totalorder %s353, 1
                  %s358 = sphi %s327, %s327
                  %s359 = sphi %s323, %s323
                $region58: #{tpu_custom_call.1} parent=54 // loop_header_branch
                  %356 = sbr.rel (%p354) target = $region62
                $region59: #{tpu_custom_call.1} parent=54 // loop_body
                  %v360 = vld [vmem:[%s358] sm:%s351]
                  %361 = vst [vmem:[%s359] sm:%s351] %v360
                  %v362 = vld [vmem:[%s358 + $0x8] sm:%s351]
                  %363 = vst [vmem:[%s359 + $0x2] sm:%s351] %v362
                $region60: #{tpu_custom_call.1} parent=54 // loop_footer
                  %s357 = sadd.s32 1, %s353
                $region61: #{tpu_custom_call.1} parent=54 // loop_footer_branch
                  %352 = sbr.rel target = $region57
                $region62: #{tpu_custom_call.1} parent=54 // loop_exit
                  _
              $region55: #{tpu_custom_call.1} parent=39 // pred_fallthru
                _
            $region40: #{tpu_custom_call.1} parent=35 // pred_fallthru
              _
            // Predicated region
            $region41: #{tpu_custom_call.1} parent=35 // pred_check
              _
            $region42: #{tpu_custom_call.1} parent=35 // pred_check_branch
              %333 = sbr.rel (0) target = $region44
            $region43: #{tpu_custom_call.1} parent=35 // pred_region
              %s335 = ssub.s32 4, 1
              loop: start=0, step=1, limit=1
              $region45: #{tpu_custom_call.1} parent=43 // loop_pre_header
                _
              $region46: #{tpu_custom_call.1} parent=43 // loop_header
                %s337 = sphi 0, %s341
                %p338 = scmp.ge.s32.totalorder %s337, 1
                %s342 = sphi %s327, %s327
                %s343 = sphi %s323, %s323
              $region47: #{tpu_custom_call.1} parent=43 // loop_header_branch
                %340 = sbr.rel (%p338) target = $region51
              $region48: #{tpu_custom_call.1} parent=43 // loop_body
                %v344 = vld [vmem:[%s342] sm:%s335]
                %345 = vst [vmem:[%s343] sm:%s335] %v344
                %v346 = vld [vmem:[%s342 + $0x8] sm:%s335]
                %347 = vst [vmem:[%s343 + $0x2] sm:%s335] %v346
              $region49: #{tpu_custom_call.1} parent=43 // loop_footer
                %s341 = sadd.s32 1, %s337
              $region50: #{tpu_custom_call.1} parent=43 // loop_footer_branch
                %336 = sbr.rel target = $region46
              $region51: #{tpu_custom_call.1} parent=43 // loop_exit
                _
            $region44: #{tpu_custom_call.1} parent=35 // pred_fallthru
              _
          $region36: #{tpu_custom_call.1} parent=31 // pred_fallthru
            _
          %364 = vnop
        $region32: #{tpu_custom_call.1} parent=15 // pred_fallthru
          _
      $region16: #{tpu_custom_call.1} parent=5 // pred_fallthru
        _
      %p365 = scmp.le.s32.totalorder 1, %s44
      %p366 = scmp.lt.s32.totalorder %s44, 5
      %p367 = pnand %p365, %p366
      %p368 = pneg %p367
      // Predicated region
      $region63: #{tpu_custom_call.1} parent=5 // pred_check
        _
      $region64: #{tpu_custom_call.1} parent=5 // pred_check_branch
        %370 = sbr.rel (%p367) target = $region66
      $region65: #{tpu_custom_call.1} parent=5 // pred_region
        %s371 = ssub.s32 %s44, 1
        %s372 = sand.u32 %s73, 1
        %s373 = scalar_lea.sflag [#allocation10], %s372
        %s374 = sand.u32 %s73, 1
        %s375 = smul.addr %s374, 4
        %s376 = scalar_lea.vmem [#allocation9], %s375
        // Predicated region
        $region67: #{tpu_custom_call.1} parent=65 // pred_check
          %p377 = pneg %p86
        $region68: #{tpu_custom_call.1} parent=65 // pred_check_branch
          %379 = sbr.rel (%p377) target = $region70
        $region69: #{tpu_custom_call.1} parent=65 // pred_region
          %380 = dma.done %s373, 64
        $region70: #{tpu_custom_call.1} parent=65 // pred_fallthru
          _
        %s381 = sand.u32 %s49, 1
        %s382 = scalar_lea.sflag [#allocation13], %s381
        %s383 = sand.u32 %s103, 1
        %s384 = smul.addr %s383, 4
        %s385 = scalar_lea.vmem [#allocation12], %s384
        // Predicated region
        $region71: #{tpu_custom_call.1} parent=65 // pred_check
          %p386 = pneg %p116
        $region72: #{tpu_custom_call.1} parent=65 // pred_check_branch
          %388 = sbr.rel (%p386) target = $region74
        $region73: #{tpu_custom_call.1} parent=65 // pred_region
          %389 = dma.done %s382, 64
        $region74: #{tpu_custom_call.1} parent=65 // pred_fallthru
          _
        %s390 = sand.u32 %s49, 1
        %s391 = scalar_lea.sflag [#allocation13], %s390
        %s392 = sand.u32 %s133, 1
        %s393 = smul.addr %s392, 4
        %s394 = scalar_lea.vmem [#allocation14], %s393
        // Predicated region
        $region75: #{tpu_custom_call.1} parent=65 // pred_check
          %p395 = pneg %p146
        $region76: #{tpu_custom_call.1} parent=65 // pred_check_branch
          %397 = sbr.rel (%p395) target = $region78
        $region77: #{tpu_custom_call.1} parent=65 // pred_region
          %398 = dma.done %s391, 64
        $region78: #{tpu_custom_call.1} parent=65 // pred_fallthru
          _
        %s399 = sand.u32 %s163, 1
        %s400 = sand.u32 %s163, 1
        %s401 = smul.addr %s400, 4
        %s402 = scalar_lea.vmem [#allocation15], %s401
        // Predicated region
        $region79: #{tpu_custom_call.1} parent=65 // pred_check
          %p403 = pneg %p176
        $region80: #{tpu_custom_call.1} parent=65 // pred_check_branch
          %405 = sbr.rel (%p403) target = $region82
        $region81: #{tpu_custom_call.1} parent=65 // pred_region
          _
        $region82: #{tpu_custom_call.1} parent=65 // pred_fallthru
          _
        %s406 = sand.u32 %s73, 1
        %s407 = scalar_lea.sflag [#allocation10], %s406
        %s408 = sand.u32 %s73, 1
        %s409 = smul.addr %s408, 4
        %s410 = scalar_lea.vmem [#allocation9], %s409
        %p411 = pneg %p86
        %p412 = pneg %p83
        %s413 = sand.u32 %s49, 1
        %s414 = scalar_lea.sflag [#allocation13], %s413
        %s415 = sand.u32 %s103, 1
        %s416 = smul.addr %s415, 4
        %s417 = scalar_lea.vmem [#allocation12], %s416
        %p418 = pneg %p116
        %p419 = pneg %p113
        %s420 = sand.u32 %s49, 1
        %s421 = scalar_lea.sflag [#allocation13], %s420
        %s422 = sand.u32 %s133, 1
        %s423 = smul.addr %s422, 4
        %s424 = scalar_lea.vmem [#allocation14], %s423
        %p425 = pneg %p146
        %p426 = pneg %p143
        %s427 = sand.u32 %s163, 1
        %s428 = sand.u32 %s163, 1
        %s429 = smul.addr %s428, 4
        %s430 = scalar_lea.vmem [#allocation15], %s429
        %p431 = pneg %p176
        %p432 = pneg %p173
        %p433 = pneg %p204
        %p434 = pneg %p201
        %s435 = sand.u32 %s191, 1
        %s436 = scalar_lea.sflag [#allocation11], %s435
        %s437 = sand.u32 %s191, 1
        %s438 = smul.addr %s437, 4
        %s439 = scalar_lea.vmem [#allocation16], %s438
        %p440 = pneg %p232
        %p441 = pneg %p229
        %s442 = sand.u32 %s219, 1
        %s443 = scalar_lea.sflag [#allocation18], %s442
        %s444 = sand.u32 %s219, 1
        %s445 = smul.addr %s444, 4
        %s446 = scalar_lea.vmem [#allocation17], %s445
        %s447 = sld [smem:[#allocation3 + %s54]]
        %s448 = sld [smem:[#allocation4 + %s54]]
        %s449 = sld [smem:[#allocation5 + %s54]]
        %s450 = sld [smem:[#allocation6 + %s54]]
        %s451 = sld [smem:[#allocation7 + %s54]]
        %s452 = sld [smem:[#allocation8 + %s54]]
        %p453 = scmp.eq.s32.totalorder %s451, 0
        // Predicated region
        $region83: #{tpu_custom_call.1} parent=65 // pred_check
          %p454 = pneg %p453
        $region84: #{tpu_custom_call.1} parent=65 // pred_check_branch
          %456 = sbr.rel (%p454) target = $region86
        $region85: #{tpu_custom_call.1} parent=65 // pred_region
          %v457 = vld [vmem:[%s376] sm:$0x3]
          %v458 = vld [vmem:[%s376 + $0x2] sm:$0x3]
          %459 = vst [vmem:[%s439] sm:$0x3] %v457
          %460 = vst [vmem:[%s439 + $0x2] sm:$0x3] %v458
        $region86: #{tpu_custom_call.1} parent=65 // pred_fallthru
          _
        %p461 = scmp.ne.s32.totalorder %s451, 0
        // Predicated region
        $region87: #{tpu_custom_call.1} parent=65 // pred_check
          %p462 = pneg %p461
        $region88: #{tpu_custom_call.1} parent=65 // pred_check_branch
          %464 = sbr.rel (%p462) target = $region90
        $region89: #{tpu_custom_call.1} parent=65 // pred_region
          %v465 = vld [vmem:[%s385] sm:$0x3]
          %v466 = vld [vmem:[%s385 + $0x2] sm:$0x3]
          %467 = vst [vmem:[%s439] sm:$0x3] %v465
          %468 = vst [vmem:[%s439 + $0x2] sm:$0x3] %v466
        $region90: #{tpu_custom_call.1} parent=65 // pred_fallthru
          _
        %p469 = scmp.eq.s32.totalorder %s452, 0
        // Predicated region
        $region91: #{tpu_custom_call.1} parent=65 // pred_check
          %p470 = pneg %p469
        $region92: #{tpu_custom_call.1} parent=65 // pred_check_branch
          %472 = sbr.rel (%p470) target = $region94
        $region93: #{tpu_custom_call.1} parent=65 // pred_region
          %v473 = vld [vmem:[%s394] sm:$0x3]
          %v474 = vld [vmem:[%s394 + $0x2] sm:$0x3]
          %475 = vst [vmem:[%s446] sm:$0x3] %v473
          %476 = vst [vmem:[%s446 + $0x2] sm:$0x3] %v474
        $region94: #{tpu_custom_call.1} parent=65 // pred_fallthru
          _
        %p477 = scmp.ne.s32.totalorder %s452, 0
        // Predicated region
        $region95: #{tpu_custom_call.1} parent=65 // pred_check
          %p478 = pneg %p477
        $region96: #{tpu_custom_call.1} parent=65 // pred_check_branch
          %480 = sbr.rel (%p478) target = $region98
        $region97: #{tpu_custom_call.1} parent=65 // pred_region
          %v481 = vld [vmem:[%s402] sm:$0x3]
          %v482 = vld [vmem:[%s402 + $0x2] sm:$0x3]
          %483 = vst [vmem:[%s446] sm:$0x3] %v481
          %484 = vst [vmem:[%s446 + $0x2] sm:$0x3] %v482
        $region98: #{tpu_custom_call.1} parent=65 // pred_fallthru
          _
        %s485 = sand.u32 %s191, 1
        %s486 = scalar_lea.sflag [#allocation11], %s485
        %s487 = sand.u32 %s191, 1
        %s488 = smul.addr %s487, 4
        %s489 = scalar_lea.vmem [#allocation16], %s488
        %s490 = sand.u32 %s219, 1
        %s491 = scalar_lea.sflag [#allocation18], %s490
        %s492 = sand.u32 %s219, 1
        %s493 = smul.addr %s492, 4
        %s494 = scalar_lea.vmem [#allocation17], %s493
        // Predicated region
        $region99: #{tpu_custom_call.1} parent=65 // pred_check
          %p495 = pneg %p201
        $region100: #{tpu_custom_call.1} parent=65 // pred_check_branch
          %497 = sbr.rel (%p495) target = $region102
        $region101: #{tpu_custom_call.1} parent=65 // pred_region
          %s499 = ssub.s32 64, 64
          %500 = vsyncadd %s486, %s499
          %s501 = sadd.s32 %s53, %s54
          %s502 = smul.addr %s501, 32
          %s503 = scalar_lea.hbm %s10, %s502
          %s504 = sshll.u32 %s489, 4
          %s505 = int_to_ptr.vmem [resolvable:$true] %s504
          %510 = dma.vmem_to_hbm [thread:$0]  %s505, 64, %s503, %s486, 32, 128, 2
        $region102: #{tpu_custom_call.1} parent=65 // pred_fallthru
          _
        // Predicated region
        $region103: #{tpu_custom_call.1} parent=65 // pred_check
          %p511 = pneg %p229
        $region104: #{tpu_custom_call.1} parent=65 // pred_check_branch
          %513 = sbr.rel (%p511) target = $region106
        $region105: #{tpu_custom_call.1} parent=65 // pred_region
          %s515 = ssub.s32 64, 64
          %516 = vsyncadd %s491, %s515
          %s517 = sadd.s32 %s53, %s54
          %s518 = smul.addr %s517, 32
          %s519 = scalar_lea.hbm %s11, %s518
          %s520 = sshll.u32 %s494, 4
          %s521 = int_to_ptr.vmem [resolvable:$true] %s520
          %526 = dma.vmem_to_hbm [thread:$0]  %s521, 64, %s519, %s491, 32, 128, 2
        $region106: #{tpu_custom_call.1} parent=65 // pred_fallthru
          _
      $region66: #{tpu_custom_call.1} parent=5 // pred_fallthru
        _
      %p527 = scmp.le.s32.totalorder 2, %s44
      // Predicated region
      $region107: #{tpu_custom_call.1} parent=5 // pred_check
        %p528 = pneg %p527
      $region108: #{tpu_custom_call.1} parent=5 // pred_check_branch
        %530 = sbr.rel (%p528) target = $region110
      $region109: #{tpu_custom_call.1} parent=5 // pred_region
        %s531 = ssub.s32 %s44, 2
        // Predicated region
        $region111: #{tpu_custom_call.1} parent=109 // pred_check
          %p532 = pneg %p207
        $region112: #{tpu_custom_call.1} parent=109 // pred_check_branch
          %534 = sbr.rel (%p532) target = $region114
        $region113: #{tpu_custom_call.1} parent=109 // pred_region
          %s535 = sand.u32 %s192, 1
          %s536 = scalar_lea.sflag [#allocation11], %s535
          %s537 = sand.u32 %s192, 1
          %s538 = smul.addr %s537, 4
          %s539 = scalar_lea.vmem [#allocation16], %s538
          %540 = dma.done %s536, 64
        $region114: #{tpu_custom_call.1} parent=109 // pred_fallthru
          _
        // Predicated region
        $region115: #{tpu_custom_call.1} parent=109 // pred_check
          %p541 = pneg %p235
        $region116: #{tpu_custom_call.1} parent=109 // pred_check_branch
          %543 = sbr.rel (%p541) target = $region118
        $region117: #{tpu_custom_call.1} parent=109 // pred_region
          %s544 = sand.u32 %s220, 1
          %s545 = scalar_lea.sflag [#allocation18], %s544
          %s546 = sand.u32 %s220, 1
          %s547 = smul.addr %s546, 4
          %s548 = scalar_lea.vmem [#allocation17], %s547
          %549 = dma.done %s545, 64
        $region118: #{tpu_custom_call.1} parent=109 // pred_fallthru
          _
      $region110: #{tpu_custom_call.1} parent=5 // pred_fallthru
        _
    $region6: #{tpu_custom_call.1} parent=1 // loop_footer
      %s48 = sadd.s32 1, %s44
    $region7: #{tpu_custom_call.1} parent=1 // loop_footer_branch
      %43 = sbr.rel target = $region3
    $region8: #{tpu_custom_call.1} parent=1 // loop_exit
      _
    %550 = vsyncpa [#allocation10], 1
    %s551 = scalar_lea.sflag [#allocation10], 1
    %552 = vsyncpa %s551, 1
    %553 = vsyncpa [#allocation13], 1
    %s554 = scalar_lea.sflag [#allocation13], 1
    %555 = vsyncpa %s554, 1
    %556 = vsyncpa [#allocation11], 1
    %s557 = scalar_lea.sflag [#allocation11], 1
    %558 = vsyncpa %s557, 1
    %559 = vsyncpa [#allocation18], 1
    %s560 = scalar_lea.sflag [#allocation18], 1
    %561 = vsyncpa %s560, 1

</llo_original>
